<compile_context>
chip_gen: v5e
topology: v5e:2x2
jax: 0.10.0
libtpu: 0.0.40
codegen_flags: <defaults>
</compile_context>

<pallas_src>
import jax
import jax.numpy as jnp
from jax.experimental import pallas as pl
from jax.experimental.pallas import tpu as pltpu


def _repro_bwd_kernel(x_ref, t_ref, o_ref):
    # Load in storage dtype, upcast once (no-op for f32 inputs).
    x = x_ref[...].astype(jnp.float32)
    t = t_ref[...].astype(jnp.float32)
    c = jnp.cos(x)
    s = jnp.sin(x)
    # CSE'd form of: (t * 2c) * (-s) + (t * 2s) * c  ==  2 * (t*s*c - t*c*s)
    tc = t * c
    ts = t * s
    out = (ts * c - tc * s) * 2.0
    o_ref[...] = out.astype(o_ref.dtype)


_LANE = 128
_MAX_LANES = 8192              # wide lane-dense last dim: unmasked vst, few DMAs
_TARGET_TILE_BYTES = 2 << 20   # 2 MiB/buffer; 3 bufs x 2 (double-buffer) = 12 MiB
_MIN_GRID_STEPS = 8            # keep both v7x TCs busy + hide pipeline fill/drain
_SMALL_FAST_PATH_BYTES = 1 << 20


def _repro_bwd_jnp(primals_1, tangents_1):
    # Exact aten op ordering (fallback / fast path for tiny or odd-sized inputs).
    cos = jnp.cos(primals_1)
    sin = jnp.sin(primals_1)
    mul_2 = (tangents_1 * (cos * 2.0)) * (-sin)
    mul_5 = (tangents_1 * (sin * 2.0)) * cos
    return mul_2 + mul_5


def repro_backward(primals_1, tangents_1, *, force_pallas=False):
    """Elementwise backward; primals_1 / tangents_1 share an arbitrary shape."""
    assert primals_1.shape == tangents_1.shape
    orig_shape = primals_1.shape
    dtype = primals_1.dtype
    n = primals_1.size
    itemsize = jnp.dtype(dtype).itemsize

    # Small-size / non-128-divisible fast path: XLA fuses this chain fine and
    # pallas_call launch overhead dominates tiny tensors.
    if (not force_pallas and n * itemsize < _SMALL_FAST_PATH_BYTES) or n % _LANE != 0:
        return _repro_bwd_jnp(primals_1, tangents_1)

    # Widest power-of-two multiple of 128 lanes that exactly divides n
    # (no host-side padding / trailing slice -> no extra HBM copies).
    c = _LANE
    while c * 2 <= _MAX_LANES and n % (c * 2) == 0:
        c *= 2
    rows = n // c

    x2 = primals_1.reshape(rows, c)
    t2 = tangents_1.reshape(rows, c)

    # Dtype-aware sublane packing: 8 rows/f32, 16/bf16, 32/int8-fp8.
    sub = max(8, 32 // itemsize)
    row_bytes = c * itemsize
    rows_per_tile_budget = max(sub, (_TARGET_TILE_BYTES // row_bytes) // sub * sub)

    if rows <= rows_per_tile_budget:
        # Whole array fits one VMEM block: full-extent block is always legal
        # (block dims == array dims), grid of 1 is fine for sub-2MiB arrays.
        tile_r = rows
        grid = (1,)
    else:
        # Cap the tile so the 1-D parallel grid has >= _MIN_GRID_STEPS steps:
        # feeds both v7x TensorCores and keeps DMA double-buffering effective.
        steps_cap = max(sub, (pl.cdiv(rows, _MIN_GRID_STEPS) // sub) * sub)
        tile_r = min(rows_per_tile_budget, steps_cap)
        # cdiv grid; Pallas masks writes of the ragged last row-block.
        grid = (pl.cdiv(rows, tile_r),)

    # Explicit VMEM budget from the real footprint: 2 inputs + 1 output,
    # each double-buffered, plus ~2 MiB Mosaic scratch headroom.
    tile_bytes = tile_r * c * itemsize
    vmem_limit = max(3 * 2 * tile_bytes + (2 << 20), 4 << 20)

    out2 = pl.pallas_call(
        _repro_bwd_kernel,
        out_shape=jax.ShapeDtypeStruct((rows, c), dtype),
        grid_spec=pltpu.PrefetchScalarGridSpec(
            num_scalar_prefetch=0,
            grid=grid,
            in_specs=[
                pl.BlockSpec((tile_r, c), lambda i: (i, 0)),
                pl.BlockSpec((tile_r, c), lambda i: (i, 0)),
            ],
            out_specs=pl.BlockSpec((tile_r, c), lambda i: (i, 0)),
        ),
        compiler_params=pltpu.CompilerParams(
            dimension_semantics=("parallel",),
            vmem_limit_bytes=int(vmem_limit),
        ),
    )(x2, t2)

    return out2.reshape(orig_shape)


def repro_backward_ref(primals_1, tangents_1):
    return _repro_bwd_jnp(primals_1, tangents_1)


if __name__ == "__main__":
    key = jax.random.PRNGKey(0)
    k1, k2 = jax.random.split(key)

    # Small demo shape consistent with the module (NCHW-like); force the
    # Pallas path so the kernel itself is exercised.
    shape = (2, 4, 16, 16)
    primals_1 = jax.random.normal(k1, shape, dtype=jnp.float32)
    tangents_1 = jax.random.normal(k2, shape, dtype=jnp.float32)

    out = repro_backward(primals_1, tangents_1, force_pallas=True)
    out = jax.block_until_ready(out)
    ref = repro_backward_ref(primals_1, tangents_1)
    assert out.shape == shape and out.dtype == jnp.float32
    assert jnp.allclose(out, ref, atol=1e-5, rtol=1e-5)

    # Secondary check: a larger array that exercises the multi-step grid
    # (>= 8 tiles, ragged-safe path) while staying modest in size (~4 MiB).
    shape2 = (4, 8, 128, 256)
    p2 = jax.random.normal(k1, shape2, dtype=jnp.float32)
    t2 = jax.random.normal(k2, shape2, dtype=jnp.float32)
    out2 = jax.block_until_ready(repro_backward(p2, t2))
    ref2 = repro_backward_ref(p2, t2)
    assert out2.shape == shape2
    assert jnp.allclose(out2, ref2, atol=1e-5, rtol=1e-5)

    print("KERNEL_OK")
</pallas_src>

<mosaic_0001>
module attributes {stable_mosaic.version = 11 : i64} {
  func.func @_repro_bwd_kernel(%arg0: i32, %arg1: memref<1x2048xf32, #tpu.memory_space<vmem>>, %arg2: memref<1x2048xf32, #tpu.memory_space<vmem>>, %arg3: memref<1x2048xf32, #tpu.memory_space<vmem>>) attributes {dimension_semantics = [#tpu.dimension_semantics<parallel>], iteration_bounds = array<i64: 1>, scalar_prefetch = 0 : i64, scratch_operands = 0 : i64, tpu.core_type = #tpu.core_type<tc>, window_params = [{transform_indices = @transform_0, window_bounds = array<i64: 1, 2048>}, {transform_indices = @transform_1, window_bounds = array<i64: 1, 2048>}, {transform_indices = @transform_2, window_bounds = array<i64: 1, 2048>}]} {
    %c0 = arith.constant 0 : index
    %c0_0 = arith.constant 0 : index
    %0 = vector.load %arg1[%c0, %c0_0] : memref<1x2048xf32, #tpu.memory_space<vmem>>, vector<1x2048xf32>
    %c0_1 = arith.constant 0 : index
    %c0_2 = arith.constant 0 : index
    %1 = vector.load %arg2[%c0_1, %c0_2] : memref<1x2048xf32, #tpu.memory_space<vmem>>, vector<1x2048xf32>
    %2 = math.cos %0 : vector<1x2048xf32>
    %3 = math.sin %0 : vector<1x2048xf32>
    %4 = arith.mulf %1, %2 : vector<1x2048xf32>
    %5 = arith.mulf %1, %3 : vector<1x2048xf32>
    %6 = arith.mulf %5, %2 : vector<1x2048xf32>
    %7 = arith.mulf %4, %3 : vector<1x2048xf32>
    %8 = arith.subf %6, %7 : vector<1x2048xf32>
    %cst = arith.constant 2.000000e+00 : f32
    %9 = vector.broadcast %cst : f32 to vector<1x2048xf32>
    %10 = arith.mulf %8, %9 : vector<1x2048xf32>
    %c0_3 = arith.constant 0 : index
    %c0_4 = arith.constant 0 : index
    %11 = vector.load %arg3[%c0_3, %c0_4] : memref<1x2048xf32, #tpu.memory_space<vmem>>, vector<1x2048xf32>
    tpu.vector_store %arg3[%c0_3, %c0_4], %10 {strides = array<i32>} : memref<1x2048xf32, #tpu.memory_space<vmem>>, vector<1x2048xf32>,
    return
  }
  func.func @transform_0(%arg0: i32) -> (i32, i32) {
    %c0_i32 = arith.constant 0 : i32
    %c0_i32_0 = arith.constant 0 : i32
    return %arg0, %c0_i32 : i32, i32
  }
  func.func @transform_1(%arg0: i32) -> (i32, i32) {
    %c0_i32 = arith.constant 0 : i32
    %c0_i32_0 = arith.constant 0 : i32
    return %arg0, %c0_i32 : i32, i32
  }
  func.func @transform_2(%arg0: i32) -> (i32, i32) {
    %c0_i32 = arith.constant 0 : i32
    %c0_i32_0 = arith.constant 0 : i32
    return %arg0, %c0_i32 : i32, i32
  }
}

</mosaic_0001>

<llo_original>
// kernel: tpu_custom_call.1
$region0: #{tpu_custom_call.1}
  #allocation0 [shape = 'u32[]', space=smem, size = 0x4, offset = 0x4, fixed_abs, tag = 'smem constant byte address 0x4 - core index']
  #allocation1 [shape = 'u32[72,128]{1,0:T(1,128)}', space=vmem, size = 0x9000, scoped, tag = 'internal scratch']
  %s0 = inlined_call_operand.hbm [shape: f32[1,2048], index: 0, kind: input, shape index: {}]
  %s1 = inlined_call_operand.hbm [shape: f32[1,2048], index: 1, kind: input, shape index: {}]
  %s2 = inlined_call_operand.hbm [shape: f32[1,2048], index: 2, kind: output, shape index: {}]
  %s3 = sld [smem:[#allocation0]]
  $region26: #{tpu_custom_call.1} parent=0
    _
  %s5 = ssub.s32 1, %s3
  %s6 = scalar_select 0, %s5, %s3
  $region1: #{tpu_custom_call.1} parent=0
    #allocation2 [shape = 'u8[8192]{0}', space=vmem, size = 0x2000, scoped, tag = 'input window, operand 0, single buffered']
    #allocation3 [shape = 's32[1]{0}', space=sflag, size = 0x4, scoped, tag = 'scoped memory for tpu_custom_call.1']
    #allocation4 [shape = 's32[1]{0}', space=sflag, size = 0x4, scoped, tag = 'scoped memory for tpu_custom_call.1']
    #allocation5 [shape = 'u8[8192]{0}', space=vmem, size = 0x2000, scoped, tag = 'input window, operand 1, single buffered']
    #allocation6 [shape = 's32[1]{0}', space=sflag, size = 0x4, scoped, tag = 'scoped memory for tpu_custom_call.1']
    #allocation7 [shape = 'u8[8192]{0}', space=vmem, size = 0x2000, scoped, tag = 'output window, operand 0, single buffered']
    %7 = vsyncpa [#allocation3], 0
    %8 = vsyncpa [#allocation6], 0
    %9 = vsyncpa [#allocation4], 0
    // Predicated region
    $region2: #{tpu_custom_call.1} parent=1 // pred_check
      _
    $region3: #{tpu_custom_call.1} parent=1 // pred_check_branch
      %11 = sbr.rel (0) target = $region5
    $region4: #{tpu_custom_call.1} parent=1 // pred_region
      %13 = vsyncadd [#allocation3], 0
      %s15 = sshll.u32 %s0, 4
      %s16 = int_to_ptr.hbm [resolvable:$true] %s15
      %s17 = sshll.u32 [#allocation2], 4
      %s18 = int_to_ptr.vmem [resolvable:$true] %s17
      %20 = dma.hbm_to_vmem [thread:$0]  %s16, 256, %s18, [#allocation3]
    $region5: #{tpu_custom_call.1} parent=1 // pred_fallthru
      _
    // Predicated region
    $region6: #{tpu_custom_call.1} parent=1 // pred_check
      _
    $region7: #{tpu_custom_call.1} parent=1 // pred_check_branch
      %22 = sbr.rel (0) target = $region9
    $region8: #{tpu_custom_call.1} parent=1 // pred_region
      %24 = vsyncadd [#allocation6], 0
      %s26 = sshll.u32 %s1, 4
      %s27 = int_to_ptr.hbm [resolvable:$true] %s26
      %s28 = sshll.u32 [#allocation5], 4
      %s29 = int_to_ptr.vmem [resolvable:$true] %s28
      %31 = dma.hbm_to_vmem [thread:$0]  %s27, 256, %s29, [#allocation6]
    $region9: #{tpu_custom_call.1} parent=1 // pred_fallthru
      _
    // Predicated region
    $region10: #{tpu_custom_call.1} parent=1 // pred_check
      _
    $region11: #{tpu_custom_call.1} parent=1 // pred_check_branch
      %33 = sbr.rel (0) target = $region13
    $region12: #{tpu_custom_call.1} parent=1 // pred_region
      %35 = dma.done [#allocation3], 256
    $region13: #{tpu_custom_call.1} parent=1 // pred_fallthru
      _
    // Predicated region
    $region14: #{tpu_custom_call.1} parent=1 // pred_check
      _
    $region15: #{tpu_custom_call.1} parent=1 // pred_check_branch
      %37 = sbr.rel (0) target = $region17
    $region16: #{tpu_custom_call.1} parent=1 // pred_region
      %39 = dma.done [#allocation6], 256
    $region17: #{tpu_custom_call.1} parent=1 // pred_fallthru
      _
    %v40 = vld [vmem:[#allocation2] sm:$0xff]
    %v41 = vld [vmem:[#allocation2 + $0x8] sm:$0xff]
    %v42 = vld [vmem:[#allocation5] sm:$0xff]
    %v43 = vld [vmem:[#allocation5 + $0x8] sm:$0xff]
    %v44 = vand.u32 2147483647, %v40
    %vm45 = vcmp.le.f32.partialorder %v44, 0.7853982
    %vm46 = vcmp.lt.s32.totalorder %v40, 0
    %v47 = vand.u32 %v40, 2139095040
    %v48 = vshrl.u32 %v47, 23
    %v49 = vsub.s32 %v48, 127
    %v50 = vand.u32 2147483647, %v40
    %v51 = vand.u32 %v50, 8388607
    %v52 = vor.u32 %v51, 8388608
    %v53 = vsub.s32 0, %v52
    %v54 = vadd.s32 %v49, 1
    %vm55 = vcmp.gt.s32.totalorder %v54, 0
    %v56 = vsel %vm55, %v54, 0
    %v57 = vshrl.u32 %v56, 5
    %v58 = vand.u32 %v56, 31
    %v59 = vsub.s32 32, %v58
    %v60 = vshrl.u32 683565275, %v59
    %v61 = vshll.u32 683565275, %v58
    %v62 = vshrl.u32 2475754826, %v59
    %v63 = vor.u32 %v61, %v62
    %v64 = vshll.u32 2475754826, %v58
    %v65 = vshrl.u32 2131351028, %v59
    %v66 = vor.u32 %v64, %v65
    %v67 = vshll.u32 2131351028, %v58
    %v68 = vshrl.u32 2102212464, %v59
    %v69 = vor.u32 %v67, %v68
    %v70 = vshll.u32 2102212464, %v58
    %v71 = vshrl.u32 920167782, %v59
    %v72 = vor.u32 %v70, %v71
    %v73 = vshll.u32 920167782, %v58
    %v74 = vshrl.u32 1326507024, %v59
    %v75 = vor.u32 %v73, %v74
    %vm76 = vcmp.lt.s32.totalorder %v57, 1
    %vm77 = vcmp.lt.s32.totalorder %v57, 2
    %vm78 = vcmp.lt.s32.totalorder %v57, 3
    %vm79 = vcmp.lt.s32.totalorder %v57, 4
    %v80 = vsel %vm76, %v60, %v63
    %v81 = vsel %vm79, %v69, 2102212464
    %v82 = vsel %vm78, %v66, %v81
    %v83 = vsel %vm77, %v80, %v82
    %v84 = vsel %vm76, %v63, %v66
    %v85 = vsel %vm79, %v72, 920167782
    %v86 = vsel %vm78, %v69, %v85
    %v87 = vsel %vm77, %v84, %v86
    %v88 = vsel %vm76, %v66, %v69
    %v89 = vsel %vm79, %v75, 1326507024
    %v90 = vsel %vm78, %v72, %v89
    %v91 = vsel %vm77, %v88, %v90
    %v92 = vshll.u32 %v52, 8
    %v93 = vand.u32 %v92, 65535
    %v94 = vshrl.u32 %v92, 16
    %v95 = vand.u32 %v91, 65535
    %v96 = vshrl.u32 %v91, 16
    %v97 = vmul.u32 %v93, %v95
    %v98 = vmul.u32 %v93, %v96
    %v99 = vmul.u32 %v94, %v95
    %v100 = vmul.u32 %v94, %v96
    %v101 = vshll.u32 %v98, 16
    %v102 = vshrl.u32 %v98, 16
    %v103 = vshll.u32 %v99, 16
    %v104 = vshrl.u32 %v99, 16
    %vm105 = vc.u32 %v97, %v101
    %v106 = vsel %vm105, 1, 0
    %v107 = vadd.s32 %v97, %v101
    %v108 = vadd.s32 %v100, %v106
    %vm109 = vc.u32 %v107, %v103
    %v110 = vsel %vm109, 1, 0
    %v111 = vadd.s32 %v107, %v103
    %v112 = vadd.s32 %v108, %v110
    %v113 = vadd.s32 %v112, %v102
    %v114 = vadd.s32 %v113, %v104
    %v115 = vand.u32 %v92, 65535
    %v116 = vshrl.u32 %v92, 16
    %v117 = vand.u32 %v87, 65535
    %v118 = vshrl.u32 %v87, 16
    %v119 = vmul.u32 %v115, %v117
    %v120 = vmul.u32 %v115, %v118
    %v121 = vmul.u32 %v116, %v117
    %v122 = vmul.u32 %v116, %v118
    %v123 = vshll.u32 %v120, 16
    %v124 = vshrl.u32 %v120, 16
    %v125 = vshll.u32 %v121, 16
    %v126 = vshrl.u32 %v121, 16
    %vm127 = vc.u32 %v119, %v123
    %v128 = vsel %vm127, 1, 0
    %v129 = vadd.s32 %v119, %v123
    %v130 = vadd.s32 %v122, %v128
    %vm131 = vc.u32 %v129, %v125
    %v132 = vsel %vm131, 1, 0
    %v133 = vadd.s32 %v129, %v125
    %v134 = vadd.s32 %v130, %v132
    %v135 = vadd.s32 %v134, %v124
    %v136 = vadd.s32 %v135, %v126
    %v137 = vmul.u32 %v92, %v83
    %v138 = vadd.s32 %v114, %v133
    %vm139 = vc.u32 %v114, %v133
    %v140 = vadd.s32 %v136, 1
    %v141 = vsel %vm139, %v140, %v136
    %v142 = vadd.s32 %v137, %v141
    %v143 = vadd.s32 %v142, 536870912
    %v144 = vshrl.u32 %v143, 30
    %v145 = vshll.u32 %v144, 30
    %v146 = vsub.s32 %v142, %v145
    %vm147 = vcmp.lt.s32.totalorder %v146, 0
    %v148 = vsub.s32 0, %v146
    %v149 = vsel %vm147, %v148, %v146
    %v150 = vclz %v149
    %v151 = vsub.s32 %v150, 2
    %vm152 = vcmp.gt.s32.totalorder 0, %v151
    %v153 = vsel %vm152, 0, %v151
    %v154 = vsub.s32 32, %v153
    %v155 = vshll.u32 %v146, %v153
    %v156 = vshrl.u32 %v138, %v154
    %v157 = vor.u32 %v155, %v156
    %v158 = vsub.s32 4294967266, %v153
    %v159 = vadd.s32 %v158, 127
    %v160 = vshll.u32 %v159, 23
    %v161 = vor.u32 4788187, %v160
    %v162 = vand.u32 2147483647, %v161
    %v164 = vcvt.s32.f32 %v157
    %v165 = vmul.f32 %v164, %v162
    %v166 = vxor.u32 %v165, 2147483648
    %v167 = vsel %vm46, %v166, %v165
    %v168 = vsub.s32 4, %v144
    %v169 = vsel %vm46, %v168, %v144
    %v170 = vsel %vm45, %v40, %v167
    %v171 = vsel %vm45, 0, %v169
    %v172 = vmul.f32 %v170, %v170
    %v173 = vmul.f32 %v172, -0.001358992
    %v174 = vadd.f32 %v173, 0.041655596
    %v175 = vmul.f32 %v172, %v174
    %v176 = vadd.f32 %v175, -0.4999988
    %v177 = vmul.f32 %v172, %v176
    %v178 = vadd.f32 1.0, %v177
    %v179 = vmul.f32 %v170, %v170
    %v180 = vmul.f32 %v179, -0.00019511016
    %v181 = vadd.f32 %v180, 0.008332121
    %v182 = vmul.f32 %v179, %v181
    %v183 = vadd.f32 %v182, -0.16666654
    %v184 = vmul.f32 %v179, %v183
    %v185 = vadd.f32 %v184, 1.0
    %v186 = vmul.f32 %v185, %v170
    %vm187 = vweird.f32 %v40
    %v188 = vand.u32 %v171, 3
    %vm189 = vcmp.lt.s32.totalorder %v188, 2
    %vm190 = vcmp.eq.s32.totalorder %v188, 0
    %v191 = vxor.u32 %v186, 2147483648
    %v192 = vsel %vm190, %v178, %v191
    %vm193 = vcmp.eq.s32.totalorder %v188, 2
    %v194 = vxor.u32 %v178, 2147483648
    %v195 = vsel %vm193, %v194, %v186
    %v196 = vsel %vm189, %v192, %v195
    %v197 = vsel %vm187, nan, %v196
    %v198 = vand.u32 2147483647, %v41
    %vm199 = vcmp.le.f32.partialorder %v198, 0.7853982
    %vm200 = vcmp.lt.s32.totalorder %v41, 0
    %v201 = vand.u32 %v41, 2139095040
    %v202 = vshrl.u32 %v201, 23
    %v203 = vsub.s32 %v202, 127
    %v204 = vand.u32 2147483647, %v41
    %v205 = vand.u32 %v204, 8388607
    %v206 = vor.u32 %v205, 8388608
    %v207 = vsub.s32 0, %v206
    %v208 = vadd.s32 %v203, 1
    %vm209 = vcmp.gt.s32.totalorder %v208, 0
    %v210 = vsel %vm209, %v208, 0
    %v211 = vshrl.u32 %v210, 5
    %v212 = vand.u32 %v210, 31
    %v213 = vsub.s32 32, %v212
    %v214 = vshrl.u32 683565275, %v213
    %v215 = vshll.u32 683565275, %v212
    %v216 = vshrl.u32 2475754826, %v213
    %v217 = vor.u32 %v215, %v216
    %v218 = vshll.u32 2475754826, %v212
    %v219 = vshrl.u32 2131351028, %v213
    %v220 = vor.u32 %v218, %v219
    %v221 = vshll.u32 2131351028, %v212
    %v222 = vshrl.u32 2102212464, %v213
    %v223 = vor.u32 %v221, %v222
    %v224 = vshll.u32 2102212464, %v212
    %v225 = vshrl.u32 920167782, %v213
    %v226 = vor.u32 %v224, %v225
    %v227 = vshll.u32 920167782, %v212
    %v228 = vshrl.u32 1326507024, %v213
    %v229 = vor.u32 %v227, %v228
    %vm230 = vcmp.lt.s32.totalorder %v211, 1
    %vm231 = vcmp.lt.s32.totalorder %v211, 2
    %vm232 = vcmp.lt.s32.totalorder %v211, 3
    %vm233 = vcmp.lt.s32.totalorder %v211, 4
    %v234 = vsel %vm230, %v214, %v217
    %v235 = vsel %vm233, %v223, 2102212464
    %v236 = vsel %vm232, %v220, %v235
    %v237 = vsel %vm231, %v234, %v236
    %v238 = vsel %vm230, %v217, %v220
    %v239 = vsel %vm233, %v226, 920167782
    %v240 = vsel %vm232, %v223, %v239
    %v241 = vsel %vm231, %v238, %v240
    %v242 = vsel %vm230, %v220, %v223
    %v243 = vsel %vm233, %v229, 1326507024
    %v244 = vsel %vm232, %v226, %v243
    %v245 = vsel %vm231, %v242, %v244
    %v246 = vshll.u32 %v206, 8
    %v247 = vand.u32 %v246, 65535
    %v248 = vshrl.u32 %v246, 16
    %v249 = vand.u32 %v245, 65535
    %v250 = vshrl.u32 %v245, 16
    %v251 = vmul.u32 %v247, %v249
    %v252 = vmul.u32 %v247, %v250
    %v253 = vmul.u32 %v248, %v249
    %v254 = vmul.u32 %v248, %v250
    %v255 = vshll.u32 %v252, 16
    %v256 = vshrl.u32 %v252, 16
    %v257 = vshll.u32 %v253, 16
    %v258 = vshrl.u32 %v253, 16
    %vm259 = vc.u32 %v251, %v255
    %v260 = vsel %vm259, 1, 0
    %v261 = vadd.s32 %v251, %v255
    %v262 = vadd.s32 %v254, %v260
    %vm263 = vc.u32 %v261, %v257
    %v264 = vsel %vm263, 1, 0
    %v265 = vadd.s32 %v261, %v257
    %v266 = vadd.s32 %v262, %v264
    %v267 = vadd.s32 %v266, %v256
    %v268 = vadd.s32 %v267, %v258
    %v269 = vand.u32 %v246, 65535
    %v270 = vshrl.u32 %v246, 16
    %v271 = vand.u32 %v241, 65535
    %v272 = vshrl.u32 %v241, 16
    %v273 = vmul.u32 %v269, %v271
    %v274 = vmul.u32 %v269, %v272
    %v275 = vmul.u32 %v270, %v271
    %v276 = vmul.u32 %v270, %v272
    %v277 = vshll.u32 %v274, 16
    %v278 = vshrl.u32 %v274, 16
    %v279 = vshll.u32 %v275, 16
    %v280 = vshrl.u32 %v275, 16
    %vm281 = vc.u32 %v273, %v277
    %v282 = vsel %vm281, 1, 0
    %v283 = vadd.s32 %v273, %v277
    %v284 = vadd.s32 %v276, %v282
    %vm285 = vc.u32 %v283, %v279
    %v286 = vsel %vm285, 1, 0
    %v287 = vadd.s32 %v283, %v279
    %v288 = vadd.s32 %v284, %v286
    %v289 = vadd.s32 %v288, %v278
    %v290 = vadd.s32 %v289, %v280
    %v291 = vmul.u32 %v246, %v237
    %v292 = vadd.s32 %v268, %v287
    %vm293 = vc.u32 %v268, %v287
    %v294 = vadd.s32 %v290, 1
    %v295 = vsel %vm293, %v294, %v290
    %v296 = vadd.s32 %v291, %v295
    %v297 = vadd.s32 %v296, 536870912
    %v298 = vshrl.u32 %v297, 30
    %v299 = vshll.u32 %v298, 30
    %v300 = vsub.s32 %v296, %v299
    %vm301 = vcmp.lt.s32.totalorder %v300, 0
    %v302 = vsub.s32 0, %v300
    %v303 = vsel %vm301, %v302, %v300
    %v304 = vclz %v303
    %v305 = vsub.s32 %v304, 2
    %vm306 = vcmp.gt.s32.totalorder 0, %v305
    %v307 = vsel %vm306, 0, %v305
    %v308 = vsub.s32 32, %v307
    %v309 = vshll.u32 %v300, %v307
    %v310 = vshrl.u32 %v292, %v308
    %v311 = vor.u32 %v309, %v310
    %v312 = vsub.s32 4294967266, %v307
    %v313 = vadd.s32 %v312, 127
    %v314 = vshll.u32 %v313, 23
    %v315 = vor.u32 4788187, %v314
    %v316 = vand.u32 2147483647, %v315
    %v318 = vcvt.s32.f32 %v311
    %v319 = vmul.f32 %v318, %v316
    %v320 = vxor.u32 %v319, 2147483648
    %v321 = vsel %vm200, %v320, %v319
    %v322 = vsub.s32 4, %v298
    %v323 = vsel %vm200, %v322, %v298
    %v324 = vsel %vm199, %v41, %v321
    %v325 = vsel %vm199, 0, %v323
    %v326 = vmul.f32 %v324, %v324
    %v327 = vmul.f32 %v326, -0.001358992
    %v328 = vadd.f32 %v327, 0.041655596
    %v329 = vmul.f32 %v326, %v328
    %v330 = vadd.f32 %v329, -0.4999988
    %v331 = vmul.f32 %v326, %v330
    %v332 = vadd.f32 1.0, %v331
    %v333 = vmul.f32 %v324, %v324
    %v334 = vmul.f32 %v333, -0.00019511016
    %v335 = vadd.f32 %v334, 0.008332121
    %v336 = vmul.f32 %v333, %v335
    %v337 = vadd.f32 %v336, -0.16666654
    %v338 = vmul.f32 %v333, %v337
    %v339 = vadd.f32 %v338, 1.0
    %v340 = vmul.f32 %v339, %v324
    %vm341 = vweird.f32 %v41
    %v342 = vand.u32 %v325, 3
    %vm343 = vcmp.lt.s32.totalorder %v342, 2
    %vm344 = vcmp.eq.s32.totalorder %v342, 0
    %v345 = vxor.u32 %v340, 2147483648
    %v346 = vsel %vm344, %v332, %v345
    %vm347 = vcmp.eq.s32.totalorder %v342, 2
    %v348 = vxor.u32 %v332, 2147483648
    %v349 = vsel %vm347, %v348, %v340
    %v350 = vsel %vm343, %v346, %v349
    %v351 = vsel %vm341, nan, %v350
    %v352 = vand.u32 2147483647, %v40
    %vm353 = vcmp.le.f32.partialorder %v352, 0.7853982
    %vm354 = vcmp.lt.s32.totalorder %v40, 0
    %v355 = vand.u32 %v40, 2139095040
    %v356 = vshrl.u32 %v355, 23
    %v357 = vsub.s32 %v356, 127
    %v358 = vand.u32 2147483647, %v40
    %v359 = vand.u32 %v358, 8388607
    %v360 = vor.u32 %v359, 8388608
    %v361 = vsub.s32 0, %v360
    %v362 = vadd.s32 %v357, 1
    %vm363 = vcmp.gt.s32.totalorder %v362, 0
    %v364 = vsel %vm363, %v362, 0
    %v365 = vshrl.u32 %v364, 5
    %v366 = vand.u32 %v364, 31
    %v367 = vsub.s32 32, %v366
    %v368 = vshrl.u32 683565275, %v367
    %v369 = vshll.u32 683565275, %v366
    %v370 = vshrl.u32 2475754826, %v367
    %v371 = vor.u32 %v369, %v370
    %v372 = vshll.u32 2475754826, %v366
    %v373 = vshrl.u32 2131351028, %v367
    %v374 = vor.u32 %v372, %v373
    %v375 = vshll.u32 2131351028, %v366
    %v376 = vshrl.u32 2102212464, %v367
    %v377 = vor.u32 %v375, %v376
    %v378 = vshll.u32 2102212464, %v366
    %v379 = vshrl.u32 920167782, %v367
    %v380 = vor.u32 %v378, %v379
    %v381 = vshll.u32 920167782, %v366
    %v382 = vshrl.u32 1326507024, %v367
    %v383 = vor.u32 %v381, %v382
    %vm384 = vcmp.lt.s32.totalorder %v365, 1
    %vm385 = vcmp.lt.s32.totalorder %v365, 2
    %vm386 = vcmp.lt.s32.totalorder %v365, 3
    %vm387 = vcmp.lt.s32.totalorder %v365, 4
    %v388 = vsel %vm384, %v368, %v371
    %v389 = vsel %vm387, %v377, 2102212464
    %v390 = vsel %vm386, %v374, %v389
    %v391 = vsel %vm385, %v388, %v390
    %v392 = vsel %vm384, %v371, %v374
    %v393 = vsel %vm387, %v380, 920167782
    %v394 = vsel %vm386, %v377, %v393
    %v395 = vsel %vm385, %v392, %v394
    %v396 = vsel %vm384, %v374, %v377
    %v397 = vsel %vm387, %v383, 1326507024
    %v398 = vsel %vm386, %v380, %v397
    %v399 = vsel %vm385, %v396, %v398
    %v400 = vshll.u32 %v360, 8
    %v401 = vand.u32 %v400, 65535
    %v402 = vshrl.u32 %v400, 16
    %v403 = vand.u32 %v399, 65535
    %v404 = vshrl.u32 %v399, 16
    %v405 = vmul.u32 %v401, %v403
    %v406 = vmul.u32 %v401, %v404
    %v407 = vmul.u32 %v402, %v403
    %v408 = vmul.u32 %v402, %v404
    %v409 = vshll.u32 %v406, 16
    %v410 = vshrl.u32 %v406, 16
    %v411 = vshll.u32 %v407, 16
    %v412 = vshrl.u32 %v407, 16
    %vm413 = vc.u32 %v405, %v409
    %v414 = vsel %vm413, 1, 0
    %v415 = vadd.s32 %v405, %v409
    %v416 = vadd.s32 %v408, %v414
    %vm417 = vc.u32 %v415, %v411
    %v418 = vsel %vm417, 1, 0
    %v419 = vadd.s32 %v415, %v411
    %v420 = vadd.s32 %v416, %v418
    %v421 = vadd.s32 %v420, %v410
    %v422 = vadd.s32 %v421, %v412
    %v423 = vand.u32 %v400, 65535
    %v424 = vshrl.u32 %v400, 16
    %v425 = vand.u32 %v395, 65535
    %v426 = vshrl.u32 %v395, 16
    %v427 = vmul.u32 %v423, %v425
    %v428 = vmul.u32 %v423, %v426
    %v429 = vmul.u32 %v424, %v425
    %v430 = vmul.u32 %v424, %v426
    %v431 = vshll.u32 %v428, 16
    %v432 = vshrl.u32 %v428, 16
    %v433 = vshll.u32 %v429, 16
    %v434 = vshrl.u32 %v429, 16
    %vm435 = vc.u32 %v427, %v431
    %v436 = vsel %vm435, 1, 0
    %v437 = vadd.s32 %v427, %v431
    %v438 = vadd.s32 %v430, %v436
    %vm439 = vc.u32 %v437, %v433
    %v440 = vsel %vm439, 1, 0
    %v441 = vadd.s32 %v437, %v433
    %v442 = vadd.s32 %v438, %v440
    %v443 = vadd.s32 %v442, %v432
    %v444 = vadd.s32 %v443, %v434
    %v445 = vmul.u32 %v400, %v391
    %v446 = vadd.s32 %v422, %v441
    %vm447 = vc.u32 %v422, %v441
    %v448 = vadd.s32 %v444, 1
    %v449 = vsel %vm447, %v448, %v444
    %v450 = vadd.s32 %v445, %v449
    %v451 = vadd.s32 %v450, 536870912
    %v452 = vshrl.u32 %v451, 30
    %v453 = vshll.u32 %v452, 30
    %v454 = vsub.s32 %v450, %v453
    %vm455 = vcmp.lt.s32.totalorder %v454, 0
    %v456 = vsub.s32 0, %v454
    %v457 = vsel %vm455, %v456, %v454
    %v458 = vclz %v457
    %v459 = vsub.s32 %v458, 2
    %vm460 = vcmp.gt.s32.totalorder 0, %v459
    %v461 = vsel %vm460, 0, %v459
    %v462 = vsub.s32 32, %v461
    %v463 = vshll.u32 %v454, %v461
    %v464 = vshrl.u32 %v446, %v462
    %v465 = vor.u32 %v463, %v464
    %v466 = vsub.s32 4294967266, %v461
    %v467 = vadd.s32 %v466, 127
    %v468 = vshll.u32 %v467, 23
    %v469 = vor.u32 4788187, %v468
    %v470 = vand.u32 2147483647, %v469
    %v472 = vcvt.s32.f32 %v465
    %v473 = vmul.f32 %v472, %v470
    %v474 = vxor.u32 %v473, 2147483648
    %v475 = vsel %vm354, %v474, %v473
    %v476 = vsub.s32 4, %v452
    %v477 = vsel %vm354, %v476, %v452
    %v478 = vsel %vm353, %v40, %v475
    %v479 = vsel %vm353, 0, %v477
    %v480 = vmul.f32 %v478, %v478
    %v481 = vmul.f32 %v480, -0.001358992
    %v482 = vadd.f32 %v481, 0.041655596
    %v483 = vmul.f32 %v480, %v482
    %v484 = vadd.f32 %v483, -0.4999988
    %v485 = vmul.f32 %v480, %v484
    %v486 = vadd.f32 1.0, %v485
    %v487 = vmul.f32 %v478, %v478
    %v488 = vmul.f32 %v487, -0.00019511016
    %v489 = vadd.f32 %v488, 0.008332121
    %v490 = vmul.f32 %v487, %v489
    %v491 = vadd.f32 %v490, -0.16666654
    %v492 = vmul.f32 %v487, %v491
    %v493 = vadd.f32 %v492, 1.0
    %v494 = vmul.f32 %v493, %v478
    %vm495 = vweird.f32 %v40
    %v496 = vadd.s32 %v479, 3
    %v497 = vand.u32 %v496, 3
    %vm498 = vcmp.lt.s32.totalorder %v497, 2
    %vm499 = vcmp.eq.s32.totalorder %v497, 0
    %v500 = vxor.u32 %v494, 2147483648
    %v501 = vsel %vm499, %v486, %v500
    %vm502 = vcmp.eq.s32.totalorder %v497, 2
    %v503 = vxor.u32 %v486, 2147483648
    %v504 = vsel %vm502, %v503, %v494
    %v505 = vsel %vm498, %v501, %v504
    %v506 = vsel %vm495, nan, %v505
    %v507 = vand.u32 2147483647, %v41
    %vm508 = vcmp.le.f32.partialorder %v507, 0.7853982
    %vm509 = vcmp.lt.s32.totalorder %v41, 0
    %v510 = vand.u32 %v41, 2139095040
    %v511 = vshrl.u32 %v510, 23
    %v512 = vsub.s32 %v511, 127
    %v513 = vand.u32 2147483647, %v41
    %v514 = vand.u32 %v513, 8388607
    %v515 = vor.u32 %v514, 8388608
    %v516 = vsub.s32 0, %v515
    %v517 = vadd.s32 %v512, 1
    %vm518 = vcmp.gt.s32.totalorder %v517, 0
    %v519 = vsel %vm518, %v517, 0
    %v520 = vshrl.u32 %v519, 5
    %v521 = vand.u32 %v519, 31
    %v522 = vsub.s32 32, %v521
    %v523 = vshrl.u32 683565275, %v522
    %v524 = vshll.u32 683565275, %v521
    %v525 = vshrl.u32 2475754826, %v522
    %v526 = vor.u32 %v524, %v525
    %v527 = vshll.u32 2475754826, %v521
    %v528 = vshrl.u32 2131351028, %v522
    %v529 = vor.u32 %v527, %v528
    %v530 = vshll.u32 2131351028, %v521
    %v531 = vshrl.u32 2102212464, %v522
    %v532 = vor.u32 %v530, %v531
    %v533 = vshll.u32 2102212464, %v521
    %v534 = vshrl.u32 920167782, %v522
    %v535 = vor.u32 %v533, %v534
    %v536 = vshll.u32 920167782, %v521
    %v537 = vshrl.u32 1326507024, %v522
    %v538 = vor.u32 %v536, %v537
    %vm539 = vcmp.lt.s32.totalorder %v520, 1
    %vm540 = vcmp.lt.s32.totalorder %v520, 2
    %vm541 = vcmp.lt.s32.totalorder %v520, 3
    %vm542 = vcmp.lt.s32.totalorder %v520, 4
    %v543 = vsel %vm539, %v523, %v526
    %v544 = vsel %vm542, %v532, 2102212464
    %v545 = vsel %vm541, %v529, %v544
    %v546 = vsel %vm540, %v543, %v545
    %v547 = vsel %vm539, %v526, %v529
    %v548 = vsel %vm542, %v535, 920167782
    %v549 = vsel %vm541, %v532, %v548
    %v550 = vsel %vm540, %v547, %v549
    %v551 = vsel %vm539, %v529, %v532
    %v552 = vsel %vm542, %v538, 1326507024
    %v553 = vsel %vm541, %v535, %v552
    %v554 = vsel %vm540, %v551, %v553
    %v555 = vshll.u32 %v515, 8
    %v556 = vand.u32 %v555, 65535
    %v557 = vshrl.u32 %v555, 16
    %v558 = vand.u32 %v554, 65535
    %v559 = vshrl.u32 %v554, 16
    %v560 = vmul.u32 %v556, %v558
    %v561 = vmul.u32 %v556, %v559
    %v562 = vmul.u32 %v557, %v558
    %v563 = vmul.u32 %v557, %v559
    %v564 = vshll.u32 %v561, 16
    %v565 = vshrl.u32 %v561, 16
    %v566 = vshll.u32 %v562, 16
    %v567 = vshrl.u32 %v562, 16
    %vm568 = vc.u32 %v560, %v564
    %v569 = vsel %vm568, 1, 0
    %v570 = vadd.s32 %v560, %v564
    %v571 = vadd.s32 %v563, %v569
    %vm572 = vc.u32 %v570, %v566
    %v573 = vsel %vm572, 1, 0
    %v574 = vadd.s32 %v570, %v566
    %v575 = vadd.s32 %v571, %v573
    %v576 = vadd.s32 %v575, %v565
    %v577 = vadd.s32 %v576, %v567
    %v578 = vand.u32 %v555, 65535
    %v579 = vshrl.u32 %v555, 16
    %v580 = vand.u32 %v550, 65535
    %v581 = vshrl.u32 %v550, 16
    %v582 = vmul.u32 %v578, %v580
    %v583 = vmul.u32 %v578, %v581
    %v584 = vmul.u32 %v579, %v580
    %v585 = vmul.u32 %v579, %v581
    %v586 = vshll.u32 %v583, 16
    %v587 = vshrl.u32 %v583, 16
    %v588 = vshll.u32 %v584, 16
    %v589 = vshrl.u32 %v584, 16
    %vm590 = vc.u32 %v582, %v586
    %v591 = vsel %vm590, 1, 0
    %v592 = vadd.s32 %v582, %v586
    %v593 = vadd.s32 %v585, %v591
    %vm594 = vc.u32 %v592, %v588
    %v595 = vsel %vm594, 1, 0
    %v596 = vadd.s32 %v592, %v588
    %v597 = vadd.s32 %v593, %v595
    %v598 = vadd.s32 %v597, %v587
    %v599 = vadd.s32 %v598, %v589
    %v600 = vmul.u32 %v555, %v546
    %v601 = vadd.s32 %v577, %v596
    %vm602 = vc.u32 %v577, %v596
    %v603 = vadd.s32 %v599, 1
    %v604 = vsel %vm602, %v603, %v599
    %v605 = vadd.s32 %v600, %v604
    %v606 = vadd.s32 %v605, 536870912
    %v607 = vshrl.u32 %v606, 30
    %v608 = vshll.u32 %v607, 30
    %v609 = vsub.s32 %v605, %v608
    %vm610 = vcmp.lt.s32.totalorder %v609, 0
    %v611 = vsub.s32 0, %v609
    %v612 = vsel %vm610, %v611, %v609
    %v613 = vclz %v612
    %v614 = vsub.s32 %v613, 2
    %vm615 = vcmp.gt.s32.totalorder 0, %v614
    %v616 = vsel %vm615, 0, %v614
    %v617 = vsub.s32 32, %v616
    %v618 = vshll.u32 %v609, %v616
    %v619 = vshrl.u32 %v601, %v617
    %v620 = vor.u32 %v618, %v619
    %v621 = vsub.s32 4294967266, %v616
    %v622 = vadd.s32 %v621, 127
    %v623 = vshll.u32 %v622, 23
    %v624 = vor.u32 4788187, %v623
    %v625 = vand.u32 2147483647, %v624
    %v627 = vcvt.s32.f32 %v620
    %v628 = vmul.f32 %v627, %v625
    %v629 = vxor.u32 %v628, 2147483648
    %v630 = vsel %vm509, %v629, %v628
    %v631 = vsub.s32 4, %v607
    %v632 = vsel %vm509, %v631, %v607
    %v633 = vsel %vm508, %v41, %v630
    %v634 = vsel %vm508, 0, %v632
    %v635 = vmul.f32 %v633, %v633
    %v636 = vmul.f32 %v635, -0.001358992
    %v637 = vadd.f32 %v636, 0.041655596
    %v638 = vmul.f32 %v635, %v637
    %v639 = vadd.f32 %v638, -0.4999988
    %v640 = vmul.f32 %v635, %v639
    %v641 = vadd.f32 1.0, %v640
    %v642 = vmul.f32 %v633, %v633
    %v643 = vmul.f32 %v642, -0.00019511016
    %v644 = vadd.f32 %v643, 0.008332121
    %v645 = vmul.f32 %v642, %v644
    %v646 = vadd.f32 %v645, -0.16666654
    %v647 = vmul.f32 %v642, %v646
    %v648 = vadd.f32 %v647, 1.0
    %v649 = vmul.f32 %v648, %v633
    %vm650 = vweird.f32 %v41
    %v651 = vadd.s32 %v634, 3
    %v652 = vand.u32 %v651, 3
    %vm653 = vcmp.lt.s32.totalorder %v652, 2
    %vm654 = vcmp.eq.s32.totalorder %v652, 0
    %v655 = vxor.u32 %v649, 2147483648
    %v656 = vsel %vm654, %v641, %v655
    %vm657 = vcmp.eq.s32.totalorder %v652, 2
    %v658 = vxor.u32 %v641, 2147483648
    %v659 = vsel %vm657, %v658, %v649
    %v660 = vsel %vm653, %v656, %v659
    %v661 = vsel %vm650, nan, %v660
    %v662 = vmul.f32 %v42, %v197
    %v663 = vmul.f32 %v43, %v351
    %v664 = vmul.f32 %v42, %v506
    %v665 = vmul.f32 %v43, %v661
    %v666 = vmul.f32 %v664, %v197
    %v667 = vmul.f32 %v665, %v351
    %v668 = vmul.f32 %v662, %v506
    %v669 = vmul.f32 %v663, %v661
    %v670 = vsub.f32 %v666, %v668
    %v671 = vsub.f32 %v667, %v669
    %v672 = vmul.f32 %v670, 2.0
    %v673 = vmul.f32 %v671, 2.0
    %674 = vst [vmem:[#allocation7] sm:$0xff] %v672
    %675 = vst [vmem:[#allocation7 + $0x8] sm:$0xff] %v673
    // Predicated region
    $region18: #{tpu_custom_call.1} parent=1 // pred_check
      _
    $region19: #{tpu_custom_call.1} parent=1 // pred_check_branch
      %677 = sbr.rel (0) target = $region21
    $region20: #{tpu_custom_call.1} parent=1 // pred_region
      %679 = vsyncadd [#allocation4], 0
      %s681 = sshll.u32 [#allocation7], 4
      %s682 = int_to_ptr.vmem [resolvable:$true] %s681
      %s683 = sshll.u32 %s2, 4
      %s684 = int_to_ptr.hbm [resolvable:$true] %s683
      %686 = dma.vmem_to_hbm [thread:$0]  %s682, 256, %s684, [#allocation4]
    $region21: #{tpu_custom_call.1} parent=1 // pred_fallthru
      _
    // Predicated region
    $region22: #{tpu_custom_call.1} parent=1 // pred_check
      _
    $region23: #{tpu_custom_call.1} parent=1 // pred_check_branch
      %688 = sbr.rel (0) target = $region25
    $region24: #{tpu_custom_call.1} parent=1 // pred_region
      %690 = dma.done [#allocation4], 256
    $region25: #{tpu_custom_call.1} parent=1 // pred_fallthru
      _
    %691 = vsyncpa [#allocation3], 1
    %692 = vsyncpa [#allocation6], 1
    %693 = vsyncpa [#allocation4], 1

</llo_original>
